<compile_context>
chip_gen: v7x
topology: tpu7x:2x2x1
jax: 0.10.0
libtpu: 0.0.40
codegen_flags: <defaults>
</compile_context>

<pallas_src>
import functools

import jax
import jax.numpy as jnp
from jax.experimental import pallas as pl
from jax.experimental.pallas import tpu as pltpu


# ----------------------------------------------------------------------------
# VMEM budgeting, derived per-generation (v5e/v6e 128 MiB, v7x 64 MiB per TC).
# ----------------------------------------------------------------------------
_FALLBACK_VMEM_CAP = 64 * 1024 * 1024     # conservative: v7x physical per-TC VMEM


def _vmem_capacity_bytes():
    try:
        info = pltpu.get_tpu_info()
        for attr in ("vmem_capacity_bytes", "vmem_size_bytes", "vmem_bytes"):
            cap = getattr(info, attr, None)
            if cap:
                return int(cap)
    except Exception:
        pass
    return _FALLBACK_VMEM_CAP


def _vmem_budget():
    cap = _vmem_capacity_bytes()
    budget = (cap * 3) // 8   # ~0.375x capacity: per-step working set target
    limit = (cap * 3) // 4    # ~0.75x capacity: scoped limit, compiler headroom
    return budget, limit


# ----------------------------------------------------------------------------
# Kernel 1: bias = Linear2(ReLU(Linear1(im_features)));  ctx_shifted = ctx + bias
# ----------------------------------------------------------------------------
def _meta_ctx_kernel(x_ref, w1_ref, b1_ref, w2_ref, b2_ref, ctx_ref, out_ref):
    # Native-dtype MXU matmuls (bf16 fast path when inputs are bf16); bias add
    # and ReLU in f32. hidden (= embed_dim // 16) is tiny; do not pad to MXU
    # width -- this kernel is noise next to kernel 2's HBM writeback.
    h = jnp.dot(x_ref[...], w1_ref[...],
                preferred_element_type=jnp.float32)                  # (B, H) f32
    h = jnp.maximum(h + b1_ref[...].astype(jnp.float32), 0.0)        # ReLU
    w2 = w2_ref[...]
    bias = jnp.dot(h.astype(w2.dtype), w2,
                   preferred_element_type=jnp.float32)               # (B, C) f32
    bias = bias + b2_ref[...].astype(jnp.float32)
    ctx = ctx_ref[...].astype(jnp.float32)                           # (n_ctx, C)
    # ctx.unsqueeze(0) + bias.unsqueeze(1) -> (B, n_ctx, C)
    out_ref[...] = (ctx[None, :, :] + bias[:, None, :]).astype(out_ref.dtype)


def compute_ctx_shifted(im_features, w1, b1, w2, b2, ctx):
    B, _ = im_features.shape
    n_ctx, ctx_dim = ctx.shape
    vmem = pl.BlockSpec(memory_space=pltpu.MemorySpace.VMEM)
    # TODO(synk): add a simple B-tiled grid only if B * embed_dim grows past a
    # few MiB; for realistic CoCoOp batch sizes everything fits in one block.
    return pl.pallas_call(
        _meta_ctx_kernel,
        out_shape=jax.ShapeDtypeStruct((B, n_ctx, ctx_dim), im_features.dtype),
        in_specs=[vmem, vmem, vmem, vmem, vmem, vmem],
        out_specs=vmem,
    )(im_features, w1, b1.reshape(1, -1), w2, b2.reshape(1, -1), ctx)


# ----------------------------------------------------------------------------
# Kernel 2: prompts[b0:b0+TB, c0:c0+TC] = concat([prefix, ctx_shifted[b], suffix])
# ----------------------------------------------------------------------------
def _assemble_kernel(n_ctx, prefix_ref, ctx_ref, suffix_ref, out_ref):
    # prefix_ref : (TC, 1, D)        -- class tile (shared across batch steps)
    # ctx_ref    : (TB, n_ctx, D)    -- this batch sub-tile's shifted ctx
    # suffix_ref : (TC, L_suf, D)    -- class tile (shared across batch steps)
    # out_ref    : (TB, TC, L, D)
    tb, tc, _, d = out_ref.shape
    pre = prefix_ref[...]            # (TC, 1, D)
    suf = suffix_ref[...]            # (TC, L_suf, D)
    ctx = ctx_ref[...]               # (TB, n_ctx, D)
    for bi in range(tb):             # TB <= 4, static unroll
        # Fused prefix+ctx head: one contiguous (1+n_ctx)-row store instead of
        # two sublane-misaligned partial stores into the same 8-row tile.
        head = jnp.concatenate(
            [pre, jnp.broadcast_to(ctx[bi][None, :, :], (tc, n_ctx, d))],
            axis=1)                                        # (TC, 1+n_ctx, D)
        out_ref[bi, :, 0:1 + n_ctx, :] = head
        out_ref[bi, :, 1 + n_ctx:, :] = suf


def _pick_tiles(B, n_cls, L, L_suf, n_ctx, D, itemsize, budget_bytes):
    """Pick (batch sub-tile TB, class tile TC).

    Per-step VMEM accounting (every block double-buffered by the pipeliner):
      out:    2 * TB * TC * L * D
      suffix: 2 * TC * L_suf * D
      prefix: 2 * TC * 1 * D
      ctx:    2 * TB * n_ctx * D
    """
    tb = max(1, min(B, 4))
    while True:
        fixed = 2 * tb * n_ctx * D * itemsize
        per_cls = 2 * (tb * L + L_suf + 1) * D * itemsize
        tc = (budget_bytes - fixed) // max(per_cls, 1)
        if tc >= min(n_cls, 8) or tb == 1:
            break
        tb = max(1, tb // 2)
    tc = int(max(1, min(n_cls, tc)))
    return int(tb), tc


def assemble_prompts(ctx_shifted, prefix, suffix, *, class_tile=None, batch_tile=None):
    B, n_ctx, D = ctx_shifted.shape
    n_cls = prefix.shape[0]
    L_suf = suffix.shape[1]
    L = 1 + n_ctx + L_suf
    itemsize = jnp.dtype(ctx_shifted.dtype).itemsize

    budget, limit = _vmem_budget()
    tb_auto, tc_auto = _pick_tiles(B, n_cls, L, L_suf, n_ctx, D, itemsize, budget)
    tb = batch_tile if batch_tile is not None else tb_auto
    tc = class_tile if class_tile is not None else tc_auto
    tb = max(1, min(int(tb), B))
    tc = max(1, min(int(tc), n_cls))

    kernel = functools.partial(_assemble_kernel, n_ctx)
    # Class tile OUTER, batch sub-tile INNER: prefix/suffix block indices are
    # unchanged across consecutive batch steps, so Pallas skips their re-DMA
    # and the big suffix tile is read once per class tile, not once per batch.
    grid = (pl.cdiv(n_cls, tc), pl.cdiv(B, tb))
    return pl.pallas_call(
        kernel,
        out_shape=jax.ShapeDtypeStruct((B, n_cls, L, D), ctx_shifted.dtype),
        grid=grid,
        in_specs=[
            pl.BlockSpec((tc, 1, D), lambda c, b: (c, 0, 0)),        # prefix tile
            pl.BlockSpec((tb, n_ctx, D), lambda c, b: (b, 0, 0)),    # ctx sub-tile
            pl.BlockSpec((tc, L_suf, D), lambda c, b: (c, 0, 0)),    # suffix tile
        ],
        out_specs=pl.BlockSpec((tb, tc, L, D), lambda c, b: (b, c, 0, 0)),
        compiler_params=pltpu.CompilerParams(
            # Both axes independent: lets v7x shard across its 2 TensorCores
            # (no effect on single-TC v5e/v6e, where tile size is the lever).
            dimension_semantics=("parallel", "parallel"),
            vmem_limit_bytes=limit),
    )(prefix, ctx_shifted, suffix)


# ----------------------------------------------------------------------------
# Full forward (ctx_only handled too, like the torch module)
# ----------------------------------------------------------------------------
def cocoop_prompt_learner_forward(im_features, params, ctx_only=False,
                                  class_tile=None, batch_tile=None):
    ctx_shifted = compute_ctx_shifted(
        im_features, params["w1"], params["b1"], params["w2"], params["b2"],
        params["ctx"])
    if ctx_only:
        return ctx_shifted
    return assemble_prompts(ctx_shifted, params["token_prefix"],
                            params["token_suffix"],
                            class_tile=class_tile, batch_tile=batch_tile)


# ----------------------------------------------------------------------------
# Reference (plain JAX) for correctness check
# ----------------------------------------------------------------------------
def reference_forward(im_features, params):
    h = jnp.maximum(im_features @ params["w1"] + params["b1"], 0.0)
    bias = h @ params["w2"] + params["b2"]
    ctx_shifted = params["ctx"][None, :, :] + bias[:, None, :]
    B = im_features.shape[0]
    n_cls = params["token_prefix"].shape[0]
    n_ctx, D = params["ctx"].shape
    L_suf = params["token_suffix"].shape[1]
    pre = jnp.broadcast_to(params["token_prefix"][None], (B, n_cls, 1, D))
    ctx_i = jnp.broadcast_to(ctx_shifted[:, None], (B, n_cls, n_ctx, D))
    suf = jnp.broadcast_to(params["token_suffix"][None], (B, n_cls, L_suf, D))
    return jnp.concatenate([pre, ctx_i, suf], axis=2)


if __name__ == "__main__":
    # Small synthetic config consistent with the module:
    #   embed_dim (image feature dim), hidden = embed_dim // 16, ctx_dim (text
    #   width), n_ctx context tokens, n_cls classes, L total prompt length.
    B = 3
    embed_dim = 128
    hidden = embed_dim // 16            # meta_net bottleneck
    ctx_dim = 64
    n_ctx = 4                           # "a photo of a"
    n_cls = 5
    L = 8                               # prompt length (77 in real CLIP)
    L_suf = L - 1 - n_ctx
    dtype = jnp.float32

    key = jax.random.PRNGKey(0)
    ks = jax.random.split(key, 8)
    params = {
        # meta_net: Linear(embed_dim, hidden) -> ReLU -> Linear(hidden, ctx_dim)
        "w1": (jax.random.normal(ks[0], (embed_dim, hidden), dtype) * 0.02),
        "b1": jnp.zeros((hidden,), dtype),
        "w2": (jax.random.normal(ks[1], (hidden, ctx_dim), dtype) * 0.02),
        "b2": jnp.zeros((ctx_dim,), dtype),
        # learnable context vectors (stand-in for "a photo of a" embeddings)
        "ctx": (jax.random.normal(ks[2], (n_ctx, ctx_dim), dtype) * 0.02),
        # frozen token embeddings (SOS prefix, classname+EOS suffix)
        "token_prefix": jax.random.normal(ks[3], (n_cls, 1, ctx_dim), dtype),
        "token_suffix": jax.random.normal(ks[4], (n_cls, L_suf, ctx_dim), dtype),
    }
    im_features = jax.random.normal(ks[5], (B, embed_dim), dtype)

    ref = reference_forward(im_features, params)

    # 1) Default (auto-picked) tiles.
    prompts = cocoop_prompt_learner_forward(im_features, params, ctx_only=False)
    prompts = jax.block_until_ready(prompts)
    assert prompts.shape == (B, n_cls, L, ctx_dim), prompts.shape
    assert jnp.allclose(prompts, ref, atol=1e-5, rtol=1e-5)

    # 2) Forced small tiles -> ragged (cdiv) class and batch tiles, exercising
    #    the masked partial-block writeback path.
    prompts_ragged = cocoop_prompt_learner_forward(
        im_features, params, ctx_only=False, class_tile=2, batch_tile=2)
    prompts_ragged = jax.block_until_ready(prompts_ragged)
    assert jnp.allclose(prompts_ragged, ref, atol=1e-5, rtol=1e-5)

    # 3) ctx_only path.
    ctx_only_out = jax.block_until_ready(
        cocoop_prompt_learner_forward(im_features, params, ctx_only=True))
    assert ctx_only_out.shape == (B, n_ctx, ctx_dim)
    ref_ctx = (params["ctx"][None, :, :] +
               (jnp.maximum(im_features @ params["w1"] + params["b1"], 0.0)
                @ params["w2"] + params["b2"])[:, None, :])
    assert jnp.allclose(ctx_only_out, ref_ctx, atol=1e-5, rtol=1e-5)

    print("KERNEL_OK")
</pallas_src>

<mosaic_0001>
module attributes {stable_mosaic.version = 11 : i64} {
  func.func @_meta_ctx_kernel(%arg0: memref<3x128xf32, #tpu.memory_space<vmem>>, %arg1: memref<128x8xf32, #tpu.memory_space<vmem>>, %arg2: memref<1x8xf32, #tpu.memory_space<vmem>>, %arg3: memref<8x64xf32, #tpu.memory_space<vmem>>, %arg4: memref<1x64xf32, #tpu.memory_space<vmem>>, %arg5: memref<4x64xf32, #tpu.memory_space<vmem>>, %arg6: memref<3x4x64xf32, #tpu.memory_space<vmem>>) attributes {dimension_semantics = [], scalar_prefetch = 0 : i64, scratch_operands = 0 : i64, tpu.core_type = #tpu.core_type<tc>} {
    %c0 = arith.constant 0 : index
    %c0_0 = arith.constant 0 : index
    %0 = vector.load %arg0[%c0, %c0_0] : memref<3x128xf32, #tpu.memory_space<vmem>>, vector<3x128xf32>
    %c0_1 = arith.constant 0 : index
    %c0_2 = arith.constant 0 : index
    %1 = vector.load %arg1[%c0_1, %c0_2] : memref<128x8xf32, #tpu.memory_space<vmem>>, vector<128x8xf32>
    %cst = arith.constant dense<0.000000e+00> : vector<3x8xf32>
    %2 = tpu.matmul %0, %1, %cst {dimension_numbers = #tpu.dot_dimension_numbers<[1], [0], [0], [1], [0, 0, 1, 1], [], []>} : vector<3x128xf32>, vector<128x8xf32>, vector<3x8xf32> -> vector<3x8xf32>
    %c0_3 = arith.constant 0 : index
    %c0_4 = arith.constant 0 : index
    %3 = vector.load %arg2[%c0_3, %c0_4] : memref<1x8xf32, #tpu.memory_space<vmem>>, vector<1x8xf32>
    %4 = vector.broadcast %3 : vector<1x8xf32> to vector<3x8xf32>
    %5 = arith.addf %2, %4 : vector<3x8xf32>
    %cst_5 = arith.constant 0.000000e+00 : f32
    %6 = vector.broadcast %cst_5 : f32 to vector<3x8xf32>
    %7 = arith.maximumf %5, %6 : vector<3x8xf32>
    %c0_6 = arith.constant 0 : index
    %c0_7 = arith.constant 0 : index
    %8 = vector.load %arg3[%c0_6, %c0_7] : memref<8x64xf32, #tpu.memory_space<vmem>>, vector<8x64xf32>
    %cst_8 = arith.constant dense<0.000000e+00> : vector<3x64xf32>
    %9 = tpu.matmul %7, %8, %cst_8 {dimension_numbers = #tpu.dot_dimension_numbers<[1], [0], [0], [1], [0, 0, 1, 1], [], []>} : vector<3x8xf32>, vector<8x64xf32>, vector<3x64xf32> -> vector<3x64xf32>
    %c0_9 = arith.constant 0 : index
    %c0_10 = arith.constant 0 : index
    %10 = vector.load %arg4[%c0_9, %c0_10] : memref<1x64xf32, #tpu.memory_space<vmem>>, vector<1x64xf32>
    %11 = vector.broadcast %10 : vector<1x64xf32> to vector<3x64xf32>
    %12 = arith.addf %9, %11 : vector<3x64xf32>
    %c0_11 = arith.constant 0 : index
    %c0_12 = arith.constant 0 : index
    %13 = vector.load %arg5[%c0_11, %c0_12] : memref<4x64xf32, #tpu.memory_space<vmem>>, vector<4x64xf32>
    %14 = vector.shape_cast %13 : vector<4x64xf32> to vector<1x4x64xf32>
    %15 = vector.shape_cast %12 : vector<3x64xf32> to vector<3x1x64xf32>
    %16 = vector.broadcast %14 : vector<1x4x64xf32> to vector<3x4x64xf32>
    %17 = vector.broadcast %15 : vector<3x1x64xf32> to vector<3x4x64xf32>
    %18 = arith.addf %16, %17 : vector<3x4x64xf32>
    %c0_13 = arith.constant 0 : index
    %c0_14 = arith.constant 0 : index
    %c0_15 = arith.constant 0 : index
    %19 = vector.load %arg6[%c0_13, %c0_14, %c0_15] : memref<3x4x64xf32, #tpu.memory_space<vmem>>, vector<3x4x64xf32>
    tpu.vector_store %arg6[%c0_13, %c0_14, %c0_15], %18 {strides = array<i32>} : memref<3x4x64xf32, #tpu.memory_space<vmem>>, vector<3x4x64xf32>,
    return
  }
}

</mosaic_0001>

<llo_original>
// kernel: tpu_custom_call.1
$region0: #{tpu_custom_call.1}
  #allocation0 [shape = 'u32[]', space=smem, size = 0x4, offset = 0x4, fixed_abs, tag = 'smem constant byte address 0x4 - core index']
  #allocation1 [shape = 'u32[144,128]{1,0:T(1,128)}', space=vmem, size = 0x12000, scoped, tag = 'internal scratch']
  %s0 = inlined_call_operand.vmem [shape: f32[3,128], index: 0, kind: input, shape index: {}]
  %s1 = inlined_call_operand.vmem [shape: f32[128,8], index: 1, kind: input, shape index: {}]
  %s2 = inlined_call_operand.vmem [shape: f32[1,8], index: 2, kind: input, shape index: {}]
  %s3 = inlined_call_operand.vmem [shape: f32[8,64], index: 3, kind: input, shape index: {}]
  %s4 = inlined_call_operand.vmem [shape: f32[1,64], index: 4, kind: input, shape index: {}]
  %s5 = inlined_call_operand.vmem [shape: f32[4,64], index: 5, kind: input, shape index: {}]
  %s6 = inlined_call_operand.hbm [shape: f32[3,4,64], index: 6, kind: output, shape index: {}]
  %s7 = sld [smem:[#allocation0]]
  $region34: #{tpu_custom_call.1} parent=0
    _
  %s9 = ssub.s32 1, %s7
  %s10 = scalar_select 0, %s9, %s7
  $region1: #{tpu_custom_call.1} parent=0
    #allocation2 [shape = 'u8[6144]{0}', space=vmem, size = 0x1800, scoped, tag = 'output window, operand 0, single buffered']
    #allocation3 [shape = 's32[1]{0}', space=sflag, size = 0x4, scoped, tag = 'scoped memory for tpu_custom_call.1']
    %11 = vsyncpa [#allocation3], 0
    // Predicated region
    $region2: #{tpu_custom_call.1} parent=1 // pred_check
      _
    $region3: #{tpu_custom_call.1} parent=1 // pred_check_branch
      %13 = sbr.rel (0) target = $region5
    $region4: #{tpu_custom_call.1} parent=1 // pred_region
      _
    $region5: #{tpu_custom_call.1} parent=1 // pred_fallthru
      _
    // Predicated region
    $region6: #{tpu_custom_call.1} parent=1 // pred_check
      _
    $region7: #{tpu_custom_call.1} parent=1 // pred_check_branch
      %15 = sbr.rel (0) target = $region9
    $region8: #{tpu_custom_call.1} parent=1 // pred_region
      _
    $region9: #{tpu_custom_call.1} parent=1 // pred_fallthru
      _
    // Predicated region
    $region10: #{tpu_custom_call.1} parent=1 // pred_check
      _
    $region11: #{tpu_custom_call.1} parent=1 // pred_check_branch
      %17 = sbr.rel (0) target = $region13
    $region12: #{tpu_custom_call.1} parent=1 // pred_region
      _
    $region13: #{tpu_custom_call.1} parent=1 // pred_fallthru
      _
    // Predicated region
    $region14: #{tpu_custom_call.1} parent=1 // pred_check
      _
    $region15: #{tpu_custom_call.1} parent=1 // pred_check_branch
      %19 = sbr.rel (0) target = $region17
    $region16: #{tpu_custom_call.1} parent=1 // pred_region
      _
    $region17: #{tpu_custom_call.1} parent=1 // pred_fallthru
      _
    // Predicated region
    $region18: #{tpu_custom_call.1} parent=1 // pred_check
      _
    $region19: #{tpu_custom_call.1} parent=1 // pred_check_branch
      %21 = sbr.rel (0) target = $region21
    $region20: #{tpu_custom_call.1} parent=1 // pred_region
      _
    $region21: #{tpu_custom_call.1} parent=1 // pred_fallthru
      _
    // Predicated region
    $region22: #{tpu_custom_call.1} parent=1 // pred_check
      _
    $region23: #{tpu_custom_call.1} parent=1 // pred_check_branch
      %23 = sbr.rel (0) target = $region25
    $region24: #{tpu_custom_call.1} parent=1 // pred_region
      _
    $region25: #{tpu_custom_call.1} parent=1 // pred_fallthru
      _
    %v24 = vld [vmem:[%s0] sm:$0x7]
    %v25 = vld [vmem:[%s1] sm:$0xff]
    %v26 = vld [vmem:[%s1 + $0x8] sm:$0xff]
    %v27 = vld [vmem:[%s1 + $0x10] sm:$0xff]
    %v28 = vld [vmem:[%s1 + $0x18] sm:$0xff]
    %v29 = vld [vmem:[%s1 + $0x20] sm:$0xff]
    %v30 = vld [vmem:[%s1 + $0x28] sm:$0xff]
    %v31 = vld [vmem:[%s1 + $0x30] sm:$0xff]
    %v32 = vld [vmem:[%s1 + $0x38] sm:$0xff]
    %v33 = vld [vmem:[%s1 + $0x40] sm:$0xff]
    %v34 = vld [vmem:[%s1 + $0x48] sm:$0xff]
    %v35 = vld [vmem:[%s1 + $0x50] sm:$0xff]
    %v36 = vld [vmem:[%s1 + $0x58] sm:$0xff]
    %v37 = vld [vmem:[%s1 + $0x60] sm:$0xff]
    %v38 = vld [vmem:[%s1 + $0x68] sm:$0xff]
    %v39 = vld [vmem:[%s1 + $0x70] sm:$0xff]
    %v40 = vld [vmem:[%s1 + $0x78] sm:$0xff]
    %v41 = vld [vmem:[%s2] sm:$0x1]
    %v43 = vlaneseq
    %v44 = vshrl.u32 %v43, 7
    %v45 = vsub.s32 0, %v44
    %v46 = vrot.slane %v41, %v45
    %48 = vmatprep.subr.mxu0 0.0
    %49 = vmatpush1.msra.mxu0 %v25
    %50 = vmatprep.subr.mxu0 0.0
    %51 = vmatpush1.msra.mxu0 %v26
    %52 = vmatprep.subr.mxu0 0.0
    %53 = vmatpush1.msra.mxu0 %v27
    %54 = vmatprep.subr.mxu0 0.0
    %55 = vmatpush1.msra.mxu0 %v28
    %56 = vmatprep.subr.mxu0 0.0
    %57 = vmatpush1.msra.mxu0 %v29
    %58 = vmatprep.subr.mxu0 0.0
    %59 = vmatpush1.msra.mxu0 %v30
    %60 = vmatprep.subr.mxu0 0.0
    %61 = vmatpush1.msra.mxu0 %v31
    %62 = vmatprep.subr.mxu0 0.0
    %63 = vmatpush1.msra.mxu0 %v32
    %64 = vmatprep.subr.mxu0 0.0
    %65 = vmatpush1.msra.mxu0 %v33
    %66 = vmatprep.subr.mxu0 0.0
    %67 = vmatpush1.msra.mxu0 %v34
    %68 = vmatprep.subr.mxu0 0.0
    %69 = vmatpush1.msra.mxu0 %v35
    %70 = vmatprep.subr.mxu0 0.0
    %71 = vmatpush1.msra.mxu0 %v36
    %72 = vmatprep.subr.mxu0 0.0
    %73 = vmatpush1.msra.mxu0 %v37
    %74 = vmatprep.subr.mxu0 0.0
    %75 = vmatpush1.msra.mxu0 %v38
    %76 = vmatprep.subr.mxu0 0.0
    %77 = vmatpush1.msra.mxu0 %v39
    %78 = vmatprep.subr.mxu0 0.0
    %79 = vmatpush1.msra.mxu0 %v40
    %80 = vmatprep.subr.mxu0 0.0
    %81 = vmatpush1.msra.mxu0 0.0
    %82 = vmatprep.subr.mxu0 0.0
    %83 = vmatpush1.msra.mxu0 0.0
    %84 = vmatprep.subr.mxu0 0.0
    %85 = vmatpush1.msra.mxu0 0.0
    %86 = vmatprep.subr.mxu0 0.0
    %87 = vmatpush1.msra.mxu0 0.0
    %88 = vmatprep.subr.mxu0 0.0
    %89 = vmatpush1.msra.mxu0 0.0
    %90 = vmatprep.subr.mxu0 0.0
    %91 = vmatpush1.msra.mxu0 0.0
    %92 = vmatprep.subr.mxu0 0.0
    %93 = vmatpush1.msra.mxu0 0.0
    %94 = vmatprep.subr.mxu0 0.0
    %95 = vmatpush1.msra.mxu0 0.0
    %96 = vmatprep.subr.mxu0 0.0
    %97 = vmatpush1.msra.mxu0 0.0
    %98 = vmatprep.subr.mxu0 0.0
    %99 = vmatpush1.msra.mxu0 0.0
    %100 = vmatprep.subr.mxu0 0.0
    %101 = vmatpush1.msra.mxu0 0.0
    %102 = vmatprep.subr.mxu0 0.0
    %103 = vmatpush1.msra.mxu0 0.0
    %104 = vmatprep.subr.mxu0 0.0
    %105 = vmatpush1.msra.mxu0 0.0
    %106 = vmatprep.subr.mxu0 0.0
    %107 = vmatpush1.msra.mxu0 0.0
    %108 = vmatprep.subr.mxu0 0.0
    %109 = vmatpush1.msra.mxu0 0.0
    %110 = vmatprep.subr.mxu0 0.0
    %111 = vmatpush1.msra.mxu0 0.0
    %112 = vmatprep.mubr.f32.mxu0 0.0
    %113 = vmatmul.mubr.f32.gmra.mrb[0].mxu0 %v24
    %v114 = vpop.f32.mrb[0].mxu0
    %v115 = vadd.f32 %v46, %v114
    %v116 = vpop.f32.mrb[0].mxu0
    %117 = vdwg.mxu0
    %v118 = vmax.f32 %v115, 0.0
    %v119 = vld [vmem:[%s3] sm:$0xff]
    %v120 = vld [vmem:[%s4] sm:$0x1]
    %v122 = vlaneseq
    %v123 = vshrl.u32 %v122, 7
    %v124 = vsub.s32 0, %v123
    %v125 = vrot.slane %v120, %v124
    %vm127 = vcmask 64512
    %v129 = vsel %vm127, %v118, 0
    %131 = vmatprep.subr.mxu0 0.0
    %132 = vmatpush1.msra.mxu0 %v119
    %133 = vmatprep.subr.mxu0 0.0
    %134 = vmatpush1.msra.mxu0 0.0
    %135 = vmatprep.subr.mxu0 0.0
    %136 = vmatpush1.msra.mxu0 0.0
    %137 = vmatprep.subr.mxu0 0.0
    %138 = vmatpush1.msra.mxu0 0.0
    %139 = vmatprep.subr.mxu0 0.0
    %140 = vmatpush1.msra.mxu0 0.0
    %141 = vmatprep.subr.mxu0 0.0
    %142 = vmatpush1.msra.mxu0 0.0
    %143 = vmatprep.subr.mxu0 0.0
    %144 = vmatpush1.msra.mxu0 0.0
    %145 = vmatprep.subr.mxu0 0.0
    %146 = vmatpush1.msra.mxu0 0.0
    %147 = vmatprep.subr.mxu0 0.0
    %148 = vmatpush1.msra.mxu0 0.0
    %149 = vmatprep.subr.mxu0 0.0
    %150 = vmatpush1.msra.mxu0 0.0
    %151 = vmatprep.subr.mxu0 0.0
    %152 = vmatpush1.msra.mxu0 0.0
    %153 = vmatprep.subr.mxu0 0.0
    %154 = vmatpush1.msra.mxu0 0.0
    %155 = vmatprep.subr.mxu0 0.0
    %156 = vmatpush1.msra.mxu0 0.0
    %157 = vmatprep.subr.mxu0 0.0
    %158 = vmatpush1.msra.mxu0 0.0
    %159 = vmatprep.subr.mxu0 0.0
    %160 = vmatpush1.msra.mxu0 0.0
    %161 = vmatprep.subr.mxu0 0.0
    %162 = vmatpush1.msra.mxu0 0.0
    %163 = vmatprep.subr.mxu0 0.0
    %164 = vmatpush1.msra.mxu0 0.0
    %165 = vmatprep.subr.mxu0 0.0
    %166 = vmatpush1.msra.mxu0 0.0
    %167 = vmatprep.subr.mxu0 0.0
    %168 = vmatpush1.msra.mxu0 0.0
    %169 = vmatprep.subr.mxu0 0.0
    %170 = vmatpush1.msra.mxu0 0.0
    %171 = vmatprep.subr.mxu0 0.0
    %172 = vmatpush1.msra.mxu0 0.0
    %173 = vmatprep.subr.mxu0 0.0
    %174 = vmatpush1.msra.mxu0 0.0
    %175 = vmatprep.subr.mxu0 0.0
    %176 = vmatpush1.msra.mxu0 0.0
    %177 = vmatprep.subr.mxu0 0.0
    %178 = vmatpush1.msra.mxu0 0.0
    %179 = vmatprep.subr.mxu0 0.0
    %180 = vmatpush1.msra.mxu0 0.0
    %181 = vmatprep.subr.mxu0 0.0
    %182 = vmatpush1.msra.mxu0 0.0
    %183 = vmatprep.subr.mxu0 0.0
    %184 = vmatpush1.msra.mxu0 0.0
    %185 = vmatprep.subr.mxu0 0.0
    %186 = vmatpush1.msra.mxu0 0.0
    %187 = vmatprep.subr.mxu0 0.0
    %188 = vmatpush1.msra.mxu0 0.0
    %189 = vmatprep.subr.mxu0 0.0
    %190 = vmatpush1.msra.mxu0 0.0
    %191 = vmatprep.subr.mxu0 0.0
    %192 = vmatpush1.msra.mxu0 0.0
    %193 = vmatprep.subr.mxu0 0.0
    %194 = vmatpush1.msra.mxu0 0.0
    %195 = vmatprep.mubr.f32.mxu0 0.0
    %196 = vmatmul.mubr.f32.gmra.mrb[0].mxu0 %v129
    %v197 = vpop.f32.mrb[0].mxu0
    %v198 = vadd.f32 %v125, %v197
    %v199 = vpop.f32.mrb[0].mxu0
    %200 = vdwg.mxu0
    %v201 = vld [vmem:[%s5] sm:$0xf]
    %v204 = vunpack.c.l.s4 1966171168
    %v205 = vunpack.c.0.s8 %v204
    %v206 = vlaneseq
    %v207 = vshrl.u32 %v206, 7
    %v208 = vsub.s32 %v205, %v207
    %v209 = vrot.slane %v198, %v208
    %v210 = vcombine.high %v209, %v209
    %v212 = vunpack.c.l.s4 1966171168
    %v213 = vunpack.c.0.s8 %v212
    %v214 = vlaneseq
    %v215 = vshrl.u32 %v214, 7
    %v216 = vsub.s32 %v213, %v215
    %v217 = vrot.slane %v209, %v216
    %v219 = vunpack.c.l.s4 1966171168
    %v220 = vunpack.c.0.s8 %v219
    %v221 = vlaneseq
    %v222 = vshrl.u32 %v221, 7
    %v223 = vsub.s32 %v220, %v222
    %v224 = vrot.slane %v210, %v223
    %v225 = vcombine.high %v217, %v217
    %v226 = vlaneseq
    %v227 = vshrl.u32 %v226, 7
    %v228 = vsub.s32 0, %v227
    %v229 = vrot.slane %v217, %v228
    %v230 = vlaneseq
    %v231 = vshrl.u32 %v230, 7
    %v232 = vsub.s32 0, %v231
    %v233 = vrot.slane %v224, %v232
    %v234 = vlaneseq
    %v235 = vshrl.u32 %v234, 7
    %v236 = vsub.s32 0, %v235
    %v237 = vrot.slane %v225, %v236
    %v241 = vadd.f32 %v201, %v229
    %v242 = vadd.f32 %v201, %v233
    %v243 = vadd.f32 %v201, %v237
    %vm244 = vcmask 519168
    %245 = vst.msk [vmem:[#allocation2] sm:$0xf] %vm244, %v241
    %246 = vst.msk [vmem:[#allocation2 + $0x4] sm:$0xf] %vm244, %v242
    %247 = vst.msk [vmem:[#allocation2 + $0x8] sm:$0xf] %vm244, %v243
    // Predicated region
    $region26: #{tpu_custom_call.1} parent=1 // pred_check
      _
    $region27: #{tpu_custom_call.1} parent=1 // pred_check_branch
      %249 = sbr.rel (0) target = $region29
    $region28: #{tpu_custom_call.1} parent=1 // pred_region
      %s251 = ssub.s32 192, 192
      %252 = vsyncadd [#allocation3], %s251
      %s253 = sshll.u32 [#allocation2], 4
      %s254 = int_to_ptr.vmem [resolvable:$true] %s253
      %259 = dma.vmem_to_hbm [thread:$0]  %s254, 192, %s6, [#allocation3], 64, 64, 4
    $region29: #{tpu_custom_call.1} parent=1 // pred_fallthru
      _
    // Predicated region
    $region30: #{tpu_custom_call.1} parent=1 // pred_check
      _
    $region31: #{tpu_custom_call.1} parent=1 // pred_check_branch
      %261 = sbr.rel (0) target = $region33
    $region32: #{tpu_custom_call.1} parent=1 // pred_region
      %262 = dma.done [#allocation3], 192
    $region33: #{tpu_custom_call.1} parent=1 // pred_fallthru
      _
    %263 = vsyncpa [#allocation3], 1

</llo_original>
